<compile_context>
chip_gen: v7x
topology: tpu7x:2x2x1
jax: 0.10.0
libtpu: 0.0.40
codegen_flags: <defaults>
</compile_context>

<pallas_src>
import functools

import numpy as np
import jax
import jax.numpy as jnp
from jax.experimental import pallas as pl
from jax.experimental.pallas import tpu as pltpu

POOL_SIZES = (1, 2, 3, 6)
L = len(POOL_SIZES)


# ----------------------------------------------------------------------------
# Hardware-aware knobs.
# ----------------------------------------------------------------------------
def _vmem_limit_bytes():
    """~75% of physical VMEM: ~48 MiB on v7x (64 MiB), ~96 MiB on v5e/v6e (128 MiB)."""
    try:
        cap = int(pltpu.get_tpu_info().vmem_capacity_bytes)
    except Exception:
        cap = 64 * 1024 * 1024
    return max(32 * 1024 * 1024, min(cap * 3 // 4, 112 * 1024 * 1024))


def _pick_tile(extent, quantum, target):
    """Largest multiple of `quantum` <= target that divides `extent` (or full extent)."""
    if extent <= target:
        return extent
    t = (min(target, extent) // quantum) * quantum
    while t >= quantum:
        if extent % t == 0:
            return t
        t -= quantum
    return extent


def _pick_cin_tile(cin, target=512):
    if cin % 128 != 0:
        return cin
    return _pick_tile(cin, 128, target)


def _pick_cout_tile(cin, cout, wox_budget_bytes=16 * 1024 * 1024):
    # Keep Wox + G fully resident (CT == 1) whenever the bf16 Wox is modest.
    if cout % 128 != 0 or cin * cout * 2 <= wox_budget_bytes:
        return cout
    return _pick_tile(cout, 128, 1024)


# ----------------------------------------------------------------------------
# Build the (tiny) pooling / bilinear-upsample operators in numpy.
# ----------------------------------------------------------------------------
def _adaptive_pool_indicator(in_size, out_size):
    """1-D adaptive-avg-pool bin indicator A[out, in] in {0,1} (PyTorch bin edges)."""
    A = np.zeros((out_size, in_size), dtype=np.float32)
    for i in range(out_size):
        start = (i * in_size) // out_size
        end = -((-(i + 1) * in_size) // out_size)           # ceil((i+1)*in/out)
        A[i, start:end] = 1.0
    return A


def _bilinear_matrix(out_size, in_size):
    """1-D bilinear upsample operator B[out, in], align_corners=True."""
    B = np.zeros((out_size, in_size), dtype=np.float32)
    if in_size == 1:
        B[:, 0] = 1.0
        return B
    scale = (in_size - 1) / (out_size - 1)
    for y in range(out_size):
        src = y * scale
        y0 = min(int(np.floor(src)), in_size - 1)
        y1 = min(y0 + 1, in_size - 1)
        w = src - y0
        B[y, y0] += 1.0 - w
        B[y, y1] += w
    return B


def build_operators(H, W):
    """P_bin [72, HWp] (0/1), invc [72, 1] f32, U [HWp, 72], per-level offsets, HWp."""
    HW = H * W
    HW_pad = ((HW + 127) // 128) * 128
    P_blocks, U_blocks, cnt_blocks, offs, sizes = [], [], [], [], []
    for s in POOL_SIZES:
        hw = s * s
        hwp = ((hw + 7) // 8) * 8                            # 8, 8, 16, 40
        Pk = np.zeros((hwp, HW_pad), np.float32)
        Pk[:hw, :HW] = np.kron(_adaptive_pool_indicator(H, s),
                               _adaptive_pool_indicator(W, s))
        cnt = Pk.sum(axis=1)
        cnt[cnt == 0.0] = 1.0                                # padded rows (never used)
        Uk = np.zeros((HW_pad, hwp), np.float32)
        Uk[:HW, :hw] = np.kron(_bilinear_matrix(H, s), _bilinear_matrix(W, s))
        offs.append(sum(sizes))
        sizes.append(hwp)
        P_blocks.append(Pk)
        U_blocks.append(Uk)
        cnt_blocks.append(cnt)
    P_all = np.concatenate(P_blocks, axis=0)                 # [72, HWp]
    U_all = np.concatenate(U_blocks, axis=1)                 # [HWp, 72]
    invc = (1.0 / np.concatenate(cnt_blocks)).reshape(-1, 1).astype(np.float32)
    return P_all, invc, U_all, tuple(offs), tuple(sizes), HW_pad


# ----------------------------------------------------------------------------
# Parameter construction + BN folding (shared by kernel and reference).
# ----------------------------------------------------------------------------
def _convbn_params(key, cin, cout, eps=1e-5):
    kw, kb, kg, kbe, km, kv = jax.random.split(key, 6)
    w = jax.random.normal(kw, (cin, cout), jnp.float32) / np.sqrt(cin)
    b = 0.1 * jax.random.normal(kb, (cout,), jnp.float32)
    gamma = jax.random.uniform(kg, (cout,), jnp.float32, minval=0.5, maxval=1.5)
    beta = 0.1 * jax.random.normal(kbe, (cout,), jnp.float32)
    mean = 0.1 * jax.random.normal(km, (cout,), jnp.float32)
    var = jax.random.uniform(kv, (cout,), jnp.float32, minval=0.5, maxval=1.5)
    s = gamma / jnp.sqrt(var + eps)
    t = (b - mean) * s + beta
    return w, s, t


def init_params(key, in_channels, out_channels):
    Ci = in_channels // 4
    keys = jax.random.split(key, 5)
    branch = [_convbn_params(k, in_channels, Ci) for k in keys[:4]]
    wc = jnp.stack([p[0] for p in branch])                   # [4, Cin, Ci]
    sc = jnp.stack([p[1] for p in branch]).reshape(4, 1, Ci)
    tc = jnp.stack([p[2] for p in branch]).reshape(4, 1, Ci)
    w_out, s_out, t_out = _convbn_params(keys[4], 2 * in_channels, out_channels)
    # concat order is [x, feat1..feat4] -> split the out-conv weight accordingly
    wox = w_out[:in_channels]                                 # [Cin, Cout]
    wof = jnp.stack([w_out[in_channels + l * Ci: in_channels + (l + 1) * Ci]
                     for l in range(4)])                      # [4, Ci, Cout]
    so = s_out.reshape(1, -1)
    to = t_out.reshape(1, -1)
    return wc, sc, tc, wox, wof, so, to


def fold_params(params, compute_dtype):
    """Fold BN scales into conv weights (exact identity) + cast MXU operands."""
    wc, sc, tc, wox, wof, so, to = params
    wc_f = (wc * sc).astype(compute_dtype)                    # [4, Cin, Ci]
    wof_f = (wof * so).astype(compute_dtype)                  # [4, Ci, Cout]
    wox_f = (wox * so).astype(compute_dtype)                  # [Cin, Cout]
    return (wc_f, tc.astype(jnp.float32), wof_f, wox_f, to.astype(jnp.float32))


# ----------------------------------------------------------------------------
# Pallas kernels.
# ----------------------------------------------------------------------------
def _pool_accum_kernel(x_ref, p_ref, pooled_ref):
    """Pass A1: pooled += P_bin_tile @ x_tile (f32 accumulate over the HW axis)."""
    t = pl.program_id(2)

    @pl.when(t == 0)
    def _():
        pooled_ref[...] = jnp.zeros_like(pooled_ref)

    pooled_ref[0] += jnp.dot(p_ref[...], x_ref[0],
                             preferred_element_type=jnp.float32)


def _branch_kernel(pooled_ref, invc_ref, wc_ref, tc_ref, wof_ref, g_ref, *,
                   offs, sizes):
    """Pass A2 (tiny, per batch): G = concat_l( relu(pool_l @ Wc_l + tc_l) @ Wof_l )."""
    pooled = pooled_ref[0] * invc_ref[...]          # exact adaptive-avg means, f32
    for l in range(len(offs)):
        off, hwp = offs[l], sizes[l]                # 8-aligned static slices
        pk = pooled[off:off + hwp, :].astype(wc_ref.dtype)
        f = jnp.dot(pk, wc_ref[l], preferred_element_type=jnp.float32)
        f = jnp.maximum(f + tc_ref[l], 0.0)         # conv-BN-ReLU (bias only, f32)
        g_ref[0, off:off + hwp, :] = jnp.dot(
            f.astype(wof_ref.dtype), wof_ref[l],
            preferred_element_type=jnp.float32).astype(g_ref.dtype)


def _main_kernel(x_ref, u_ref, wox_ref, g_ref, to_ref, o_ref):
    """Pass B: out = relu(x @ Wox + U @ G + to) for one (n, hw, cout) tile."""
    acc = jnp.dot(x_ref[0], wox_ref[...], preferred_element_type=jnp.float32)
    acc = acc + jnp.dot(u_ref[...], g_ref[0], preferred_element_type=jnp.float32)
    o_ref[0] = jnp.maximum(acc + to_ref[...], 0.0).astype(o_ref.dtype)


# ----------------------------------------------------------------------------
# Wrapper.
# ----------------------------------------------------------------------------
def pyramid_pooling(x_nchw, params, compute_dtype=jnp.bfloat16,
                    out_dtype=jnp.bfloat16):
    N, Cin, H, W = x_nchw.shape
    HW = H * W
    wc_f, tc_f, wof_f, wox_f, to_f = fold_params(params, compute_dtype)
    Ci = wc_f.shape[-1]
    Cout = wox_f.shape[-1]

    P_np, invc_np, U_np, offs, sizes, HW_pad = build_operators(H, W)
    Ppad = P_np.shape[0]

    vmem_limit = _vmem_limit_bytes()
    big_vmem = vmem_limit >= 72 * 1024 * 1024        # v5e/v6e class parts

    x = jnp.transpose(x_nchw, (0, 2, 3, 1)).reshape(N, HW, Cin).astype(compute_dtype)
    if HW_pad != HW:
        x = jnp.pad(x, ((0, 0), (0, HW_pad - HW), (0, 0)))

    P = jnp.asarray(P_np, dtype=compute_dtype)        # 0/1 -> exact in bf16
    U = jnp.asarray(U_np, dtype=compute_dtype)
    invc = jnp.asarray(invc_np, dtype=jnp.float32)    # [Ppad, 1]

    # Pass A puts HW on the lane dim (%128); pass B only on sublanes (%8).
    hw_tile_a = _pick_tile(HW_pad, 128, 512)
    hw_tile_b = _pick_tile(HW_pad, 8, 1024 if big_vmem else 512)
    cin_tile = _pick_cin_tile(Cin)
    cout_tile = _pick_cout_tile(Cin, Cout)
    TA, TB = HW_pad // hw_tile_a, HW_pad // hw_tile_b
    CB, CT = Cin // cin_tile, Cout // cout_tile

    # -------- pass A1: pooled[N, Ppad, Cin] = P_bin @ x (f32) ----------------
    pooled = pl.pallas_call(
        _pool_accum_kernel,
        out_shape=jax.ShapeDtypeStruct((N, Ppad, Cin), jnp.float32),
        grid_spec=pltpu.PrefetchScalarGridSpec(
            num_scalar_prefetch=0,
            grid=(N, CB, TA),
            in_specs=[
                pl.BlockSpec((1, hw_tile_a, cin_tile), lambda n, c, t: (n, t, c)),
                pl.BlockSpec((Ppad, hw_tile_a), lambda n, c, t: (0, t)),
            ],
            out_specs=pl.BlockSpec((1, Ppad, cin_tile), lambda n, c, t: (n, 0, c)),
        ),
        compiler_params=pltpu.CompilerParams(
            dimension_semantics=("parallel", "parallel", "arbitrary"),
            vmem_limit_bytes=vmem_limit),
    )(x, P)

    # -------- pass A2: G[N, Ppad, Cout] (tiny, once per batch element) -------
    kernel_a2 = functools.partial(_branch_kernel, offs=offs, sizes=sizes)
    g = pl.pallas_call(
        kernel_a2,
        out_shape=jax.ShapeDtypeStruct((N, Ppad, Cout), compute_dtype),
        grid_spec=pltpu.PrefetchScalarGridSpec(
            num_scalar_prefetch=0,
            grid=(N,),
            in_specs=[
                pl.BlockSpec((1, Ppad, Cin), lambda n: (n, 0, 0)),      # pooled
                pl.BlockSpec((Ppad, 1), lambda n: (0, 0)),              # 1/counts
                pl.BlockSpec((L, Cin, Ci), lambda n: (0, 0, 0)),        # branch W
                pl.BlockSpec((L, 1, Ci), lambda n: (0, 0, 0)),          # branch bias
                pl.BlockSpec((L, Ci, Cout), lambda n: (0, 0, 0)),       # out-W (feat)
            ],
            out_specs=pl.BlockSpec((1, Ppad, Cout), lambda n: (n, 0, 0)),
        ),
        compiler_params=pltpu.CompilerParams(
            dimension_semantics=("parallel",),
            vmem_limit_bytes=vmem_limit),
    )(pooled, invc, wc_f, tc_f, wof_f)

    # -------- pass B: out = relu(x @ Wox + U @ G + to), bf16 output ----------
    out = pl.pallas_call(
        _main_kernel,
        out_shape=jax.ShapeDtypeStruct((N, HW_pad, Cout), out_dtype),
        grid_spec=pltpu.PrefetchScalarGridSpec(
            num_scalar_prefetch=0,
            grid=(N, TB, CT),
            in_specs=[
                pl.BlockSpec((1, hw_tile_b, Cin), lambda n, t, c: (n, t, 0)),     # x
                pl.BlockSpec((hw_tile_b, Ppad), lambda n, t, c: (t, 0)),          # U
                pl.BlockSpec((Cin, cout_tile), lambda n, t, c: (0, c)),           # Wox
                pl.BlockSpec((1, Ppad, cout_tile), lambda n, t, c: (n, 0, c)),    # G
                pl.BlockSpec((1, cout_tile), lambda n, t, c: (0, c)),             # bias
            ],
            out_specs=pl.BlockSpec((1, hw_tile_b, cout_tile),
                                   lambda n, t, c: (n, t, c)),
        ),
        compiler_params=pltpu.CompilerParams(
            dimension_semantics=("parallel", "parallel", "parallel"),
            vmem_limit_bytes=vmem_limit),
    )(x, U, wox_f, g, to_f)

    if HW_pad != HW:
        out = out[:, :HW, :]
    # TODO(synk): for very small Cout (demo Cout=16) the output stores are lane-masked;
    # production PSPNet has Cout >= 128 where they are full-width.
    return out.reshape(N, H, W, Cout).transpose(0, 3, 1, 2)   # NCHW (bf16)


# ----------------------------------------------------------------------------
# Pure-JAX reference (same math & same operand casts, no Pallas).
# ----------------------------------------------------------------------------
def reference(x_nchw, params, compute_dtype=jnp.bfloat16):
    wc_f, tc_f, wof_f, wox_f, to_f = fold_params(params, compute_dtype)
    N, Cin, H, W = x_nchw.shape
    HW = H * W
    P_np, invc_np, U_np, offs, sizes, HW_pad = build_operators(H, W)
    x = jnp.transpose(x_nchw, (0, 2, 3, 1)).reshape(N, HW, Cin).astype(compute_dtype)
    if HW_pad != HW:
        x = jnp.pad(x, ((0, 0), (0, HW_pad - HW), (0, 0)))
    P = jnp.asarray(P_np, dtype=compute_dtype)
    U = jnp.asarray(U_np, dtype=compute_dtype)
    invc = jnp.asarray(invc_np, jnp.float32)[None]            # [1, Ppad, 1]

    pooled = jnp.einsum('ph,nhc->npc', P, x,
                        preferred_element_type=jnp.float32) * invc
    parts = []
    for l in range(len(offs)):
        off, hwp = offs[l], sizes[l]
        f = jnp.einsum('npc,cd->npd', pooled[:, off:off + hwp].astype(compute_dtype),
                       wc_f[l], preferred_element_type=jnp.float32)
        f = jnp.maximum(f + tc_f[l], 0.0)
        parts.append(jnp.einsum('npd,do->npo', f.astype(compute_dtype), wof_f[l],
                                preferred_element_type=jnp.float32))
    G = jnp.concatenate(parts, axis=1).astype(compute_dtype)   # [N, Ppad, Cout]

    acc = jnp.einsum('nhc,co->nho', x, wox_f, preferred_element_type=jnp.float32)
    acc = acc + jnp.einsum('hp,npo->nho', U, G, preferred_element_type=jnp.float32)
    out = jnp.maximum(acc + to_f, 0.0)
    if HW_pad != HW:
        out = out[:, :HW, :]
    return out.reshape(N, H, W, -1).transpose(0, 3, 1, 2)      # NCHW, f32


if __name__ == "__main__":
    N, Cin, H, W = 2, 16, 16, 16
    Cout = 16
    key = jax.random.PRNGKey(0)
    kx, kp = jax.random.split(key)
    x = jax.random.normal(kx, (N, Cin, H, W), jnp.float32)      # NCHW, like PyTorch
    params = init_params(kp, Cin, Cout)

    out = pyramid_pooling(x, params, compute_dtype=jnp.bfloat16)
    out = jax.block_until_ready(out)
    assert out.shape == (N, Cout, H, W), out.shape
    out_f32 = out.astype(jnp.float32)

    # tight check: same bf16 operand casts in the reference
    ref_bf16 = reference(x, params, compute_dtype=jnp.bfloat16)
    err = float(jnp.max(jnp.abs(out_f32 - ref_bf16)))
    assert err < 5e-2, f"max abs err vs bf16 reference = {err}"

    # loose check: bf16 kernel vs full-f32 reference (quantization error bound)
    ref_f32 = reference(x, params, compute_dtype=jnp.float32)
    err32 = float(jnp.max(jnp.abs(out_f32 - ref_f32)))
    assert err32 < 2e-1, f"max abs err vs f32 reference = {err32}"

    print("KERNEL_OK")
</pallas_src>

<mosaic_0001>
module attributes {stable_mosaic.version = 11 : i64} {
  func.func @_pool_accum_kernel(%arg0: i32, %arg1: i32, %arg2: i32, %arg3: memref<1x256x16xbf16, #tpu.memory_space<vmem>>, %arg4: memref<72x256xbf16, #tpu.memory_space<vmem>>, %arg5: memref<1x72x16xf32, #tpu.memory_space<vmem>>) attributes {dimension_semantics = [#tpu.dimension_semantics<parallel>, #tpu.dimension_semantics<parallel>, #tpu.dimension_semantics<arbitrary>], iteration_bounds = array<i64: 2, 1, 1>, scalar_prefetch = 0 : i64, scratch_operands = 0 : i64, tpu.core_type = #tpu.core_type<tc>, window_params = [{transform_indices = @transform_0, window_bounds = array<i64: 1, 256, 16>}, {transform_indices = @transform_1, window_bounds = array<i64: 72, 256>}, {transform_indices = @transform_2, window_bounds = array<i64: 1, 72, 16>}]} {
    %c0_i32 = arith.constant 0 : i32
    %0 = arith.cmpi eq, %arg2, %c0_i32 : i32
    %1 = arith.extui %0 : i1 to i32
    %c0_i32_0 = arith.constant 0 : i32
    %2 = arith.cmpi ne, %1, %c0_i32_0 : i32
    scf.if %2 {
      %cst_11 = arith.constant 0.000000e+00 : f32
      %13 = vector.broadcast %cst_11 : f32 to vector<1x72x16xf32>
      %c0_12 = arith.constant 0 : index
      %c0_13 = arith.constant 0 : index
      %c0_14 = arith.constant 0 : index
      %14 = vector.load %arg5[%c0_12, %c0_13, %c0_14] : memref<1x72x16xf32, #tpu.memory_space<vmem>>, vector<1x72x16xf32>
      tpu.vector_store %arg5[%c0_12, %c0_13, %c0_14], %13 {strides = array<i32>} : memref<1x72x16xf32, #tpu.memory_space<vmem>>, vector<1x72x16xf32>,
    } else {
    }
    %c0 = arith.constant 0 : index
    %c0_1 = arith.constant 0 : index
    %c0_2 = arith.constant 0 : index
    %3 = vector.load %arg5[%c0, %c0_1, %c0_2] : memref<1x72x16xf32, #tpu.memory_space<vmem>>, vector<1x72x16xf32>
    %4 = vector.shape_cast %3 : vector<1x72x16xf32> to vector<72x16xf32>
    %c0_3 = arith.constant 0 : index
    %c0_4 = arith.constant 0 : index
    %5 = vector.load %arg4[%c0_3, %c0_4] : memref<72x256xbf16, #tpu.memory_space<vmem>>, vector<72x256xbf16>
    %c0_5 = arith.constant 0 : index
    %c0_6 = arith.constant 0 : index
    %c0_7 = arith.constant 0 : index
    %6 = vector.load %arg3[%c0_5, %c0_6, %c0_7] : memref<1x256x16xbf16, #tpu.memory_space<vmem>>, vector<1x256x16xbf16>
    %7 = vector.shape_cast %6 : vector<1x256x16xbf16> to vector<256x16xbf16>
    %cst = arith.constant dense<0.000000e+00> : vector<72x16xf32>
    %8 = tpu.matmul %5, %7, %cst {dimension_numbers = #tpu.dot_dimension_numbers<[1], [0], [0], [1], [0, 0, 1, 1], [], []>} : vector<72x256xbf16>, vector<256x16xbf16>, vector<72x16xf32> -> vector<72x16xf32>
    %9 = arith.addf %4, %8 : vector<72x16xf32>
    %c0_8 = arith.constant 0 : index
    %c0_9 = arith.constant 0 : index
    %c0_10 = arith.constant 0 : index
    %10 = vector.load %arg5[%c0_8, %c0_9, %c0_10] : memref<1x72x16xf32, #tpu.memory_space<vmem>>, vector<1x72x16xf32>
    %11 = vector.shape_cast %10 : vector<1x72x16xf32> to vector<72x16xf32>
    %12 = vector.shape_cast %9 : vector<72x16xf32> to vector<1x72x16xf32>
    tpu.vector_store %arg5[%c0_8, %c0_9, %c0_10], %12 {strides = array<i32>} : memref<1x72x16xf32, #tpu.memory_space<vmem>>, vector<1x72x16xf32>,
    return
  }
  func.func @transform_0(%arg0: i32, %arg1: i32, %arg2: i32) -> (i32, i32, i32) {
    %c0_i32 = arith.constant 0 : i32
    return %arg0, %arg2, %arg1 : i32, i32, i32
  }
  func.func @transform_1(%arg0: i32, %arg1: i32, %arg2: i32) -> (i32, i32) {
    %c0_i32 = arith.constant 0 : i32
    %c0_i32_0 = arith.constant 0 : i32
    return %c0_i32, %arg2 : i32, i32
  }
  func.func @transform_2(%arg0: i32, %arg1: i32, %arg2: i32) -> (i32, i32, i32) {
    %c0_i32 = arith.constant 0 : i32
    %c0_i32_0 = arith.constant 0 : i32
    return %arg0, %c0_i32, %arg1 : i32, i32, i32
  }
}

</mosaic_0001>

<llo_original>
// kernel: tpu_custom_call.1
$region0: #{tpu_custom_call.1}
  #allocation0 [shape = 'u32[]', space=smem, size = 0x4, offset = 0x4, fixed_abs, tag = 'smem constant byte address 0x4 - core index']
  #allocation1 [shape = 'u32[144,128]{1,0:T(1,128)}', space=vmem, size = 0x12000, scoped, tag = 'internal scratch']
  %s0 = inlined_call_operand.vmem [shape: bf16[2,256,16], index: 0, kind: input, shape index: {}]
  %s1 = inlined_call_operand.vmem [shape: bf16[72,256], index: 1, kind: input, shape index: {}]
  %s2 = inlined_call_operand.vmem [shape: f32[2,72,16], index: 2, kind: output, shape index: {}]
  %s3 = sld [smem:[#allocation0]]
  $region45: #{tpu_custom_call.1} parent=0
    _
  %s5 = ssub.s32 1, %s3
  %s6 = scalar_select 0, %s5, %s3
  loop: start=0, step=1, limit=4
  $region2: #{tpu_custom_call.1} parent=0 // loop_pre_header
    _
  $region3: #{tpu_custom_call.1} parent=0 // loop_header
    %s8 = sphi 0, %s12
    %p9 = scmp.ge.s32.totalorder %s8, 4
    %s15 = sphi 0, %s34
    %s16 = sphi 0, %s30
    %s17 = sphi 0, %s26
    %s18 = sphi 0, %s15
    %s19 = sphi 0, %s16
    %s20 = sphi 0, %s17
    %s21 = sphi 0, %s18
    %s22 = sphi 0, %s19
    %s23 = sphi 0, %s20
    %s41 = sphi 0, %s43
    %s44 = sphi 0, %s41
    %s45 = sphi 0, %s44
    %s61 = sphi 0, %s45
    %s67 = sphi 0, %s69
    %s70 = sphi 0, %s67
    %s71 = sphi 0, %s70
    %s87 = sphi 0, %s71
    %s95 = sphi 0, %s97
    %s98 = sphi 0, %s95
    %s99 = sphi 0, %s98
    %s115 = sphi 0, %s99
  $region4: #{tpu_custom_call.1} parent=0 // loop_header_branch
    %11 = sbr.rel (%p9) target = $region8
  $region5: #{tpu_custom_call.1} parent=0 // loop_body
    %s13 = ssub.s32 %s8, 1
    %s14 = ssub.s32 %s8, 2
    %s24 = sadd.s32 1, %s17
    %p25 = scmp.ge.s32.totalorder %s24, 1
    %s26 = scalar_select %p25, 0, %s24
    %s27 = sadd.s32 1, %s16
    %s28 = scalar_select %p25, %s27, %s16
    %p29 = scmp.ge.s32.totalorder %s28, 1
    %s30 = scalar_select %p29, 0, %s28
    %s31 = sadd.s32 1, %s15
    %s32 = scalar_select %p29, %s31, %s15
    %p33 = scmp.ge.s32.totalorder %s32, 2
    %s34 = scalar_select %p33, 0, %s32
    %s35 = ssub.s32 %s15, %s34
    %s36 = ssub.s32 %s17, %s26
    %s37 = sor.u32 %s35, %s36
    %s38 = ssub.s32 %s16, %s30
    %s39 = sor.u32 %s37, %s38
    %p40 = scmp.eq.s32.totalorder %s39, 0
    %s42 = sadd.s32 %s41, 1
    %s43 = scalar_select %p40, %s41, %s42
    %p46 = pneg %p40
    %p47 = scmp.eq.s32.totalorder %s8, 1
    %p48 = por %p46, %p47
    %p49 = scmp.ne.s32.totalorder %s41, %s44
    %p50 = scmp.eq.s32.totalorder %s8, 0
    %p51 = por %p49, %p50
    %p52 = scmp.ne.s32.totalorder %s41, %s44
    %p53 = scmp.eq.s32.totalorder %s13, 1
    %p54 = por %p52, %p53
    %p55 = scmp.ne.s32.totalorder %s44, %s45
    %p56 = scmp.eq.s32.totalorder %s13, 0
    %p57 = por %p55, %p56
    %p58 = scmp.ne.s32.totalorder %s44, %s45
    %p59 = scmp.eq.s32.totalorder %s14, 1
    %p60 = por %p58, %p59
    %p62 = scmp.ne.s32.totalorder %s45, %s61
    %p63 = scmp.eq.s32.totalorder %s14, 0
    %p64 = por %p62, %p63
    %s65 = ssub.s32 %s17, %s26
    %p66 = scmp.eq.s32.totalorder %s65, 0
    %s68 = sadd.s32 %s67, 1
    %s69 = scalar_select %p66, %s67, %s68
    %p72 = pneg %p66
    %p73 = scmp.eq.s32.totalorder %s8, 1
    %p74 = por %p72, %p73
    %p75 = scmp.ne.s32.totalorder %s67, %s70
    %p76 = scmp.eq.s32.totalorder %s8, 0
    %p77 = por %p75, %p76
    %p78 = scmp.ne.s32.totalorder %s67, %s70
    %p79 = scmp.eq.s32.totalorder %s13, 1
    %p80 = por %p78, %p79
    %p81 = scmp.ne.s32.totalorder %s70, %s71
    %p82 = scmp.eq.s32.totalorder %s13, 0
    %p83 = por %p81, %p82
    %p84 = scmp.ne.s32.totalorder %s70, %s71
    %p85 = scmp.eq.s32.totalorder %s14, 1
    %p86 = por %p84, %p85
    %p88 = scmp.ne.s32.totalorder %s71, %s87
    %p89 = scmp.eq.s32.totalorder %s14, 0
    %p90 = por %p88, %p89
    %s91 = ssub.s32 %s15, %s34
    %s92 = ssub.s32 %s16, %s30
    %s93 = sor.u32 %s91, %s92
    %p94 = scmp.eq.s32.totalorder %s93, 0
    %s96 = sadd.s32 %s95, 1
    %s97 = scalar_select %p94, %s95, %s96
    %p100 = pneg %p94
    %p101 = scmp.eq.s32.totalorder %s8, 1
    %p102 = por %p100, %p101
    %p103 = scmp.ne.s32.totalorder %s95, %s98
    %p104 = scmp.eq.s32.totalorder %s8, 0
    %p105 = por %p103, %p104
    %p106 = scmp.ne.s32.totalorder %s95, %s98
    %p107 = scmp.eq.s32.totalorder %s13, 1
    %p108 = por %p106, %p107
    %p109 = scmp.ne.s32.totalorder %s98, %s99
    %p110 = scmp.eq.s32.totalorder %s13, 0
    %p111 = por %p109, %p110
    %p112 = scmp.ne.s32.totalorder %s98, %s99
    %p113 = scmp.eq.s32.totalorder %s14, 1
    %p114 = por %p112, %p113
    %p116 = scmp.ne.s32.totalorder %s99, %s115
    %p117 = scmp.eq.s32.totalorder %s14, 0
    %p118 = por %p116, %p117
    %p119 = scmp.le.s32.totalorder 1, %s8
    %p120 = scmp.lt.s32.totalorder %s8, 3
    %p121 = pnand %p119, %p120
    %p122 = pneg %p121
    // Predicated region
    $region9: #{tpu_custom_call.1} parent=5 // pred_check
      _
    $region10: #{tpu_custom_call.1} parent=5 // pred_check_branch
      %124 = sbr.rel (%p121) target = $region12
    $region11: #{tpu_custom_call.1} parent=5 // pred_region
      %s125 = ssub.s32 %s8, 1
      // Predicated region
      $region13: #{tpu_custom_call.1} parent=11 // pred_check
        %p126 = pneg %p83
      $region14: #{tpu_custom_call.1} parent=11 // pred_check_branch
        %128 = sbr.rel (%p126) target = $region16
      $region15: #{tpu_custom_call.1} parent=11 // pred_region
        %s129 = smul.u32 2, %s20
        %p130 = scmp.lt.s32.totalorder %s129, 1
        %s131 = scalar_select %p130, %s129, 1
        %s132 = smul.addr %s131, 4
        %s133 = scalar_lea.vmem %s1, %s132
        %s134 = smul.u32 2, %s20
      $region16: #{tpu_custom_call.1} parent=11 // pred_fallthru
        _
    $region12: #{tpu_custom_call.1} parent=5 // pred_fallthru
      _
    %p135 = scmp.lt.s32.totalorder %s8, 2
    // Predicated region
    $region17: #{tpu_custom_call.1} parent=5 // pred_check
      %p136 = pneg %p135
    $region18: #{tpu_custom_call.1} parent=5 // pred_check_branch
      %138 = sbr.rel (%p136) target = $region20
    $region19: #{tpu_custom_call.1} parent=5 // pred_region
      // Predicated region
      $region21: #{tpu_custom_call.1} parent=19 // pred_check
        %p139 = pneg %p51
      $region22: #{tpu_custom_call.1} parent=19 // pred_check_branch
        %141 = sbr.rel (%p139) target = $region24
      $region23: #{tpu_custom_call.1} parent=19 // pred_region
        %s142 = smul.u32 32, %s17
        %p143 = scmp.lt.s32.totalorder %s15, 1
        %s144 = scalar_select %p143, %s15, 1
        %p145 = scmp.lt.s32.totalorder %s142, 31
        %s146 = scalar_select %p145, %s142, 31
        %p147 = scmp.lt.s32.totalorder %s16, 0
        %s148 = scalar_select %p147, %s16, 0
        %s149 = sadd.s32 %s148, %s146
        %s150 = smul.addr %s144, 32
        %s151 = sadd.s32 %s149, %s150
        %s152 = smul.addr %s151, 4
        %s153 = scalar_lea.vmem %s0, %s152
        %s154 = smul.u32 32, %s17
      $region24: #{tpu_custom_call.1} parent=19 // pred_fallthru
        _
    $region20: #{tpu_custom_call.1} parent=5 // pred_fallthru
      _
    %p155 = scmp.le.s32.totalorder 1, %s8
    %p156 = scmp.lt.s32.totalorder %s8, 3
    %p157 = pnand %p155, %p156
    %p158 = pneg %p157
    // Predicated region
    $region25: #{tpu_custom_call.1} parent=5 // pred_check
      _
    $region26: #{tpu_custom_call.1} parent=5 // pred_check_branch
      %160 = sbr.rel (%p157) target = $region28
    $region27: #{tpu_custom_call.1} parent=5 // pred_region
      %s161 = ssub.s32 %s8, 1
      %s162 = smul.u32 32, %s20
      %p163 = scmp.lt.s32.totalorder %s18, 1
      %s164 = scalar_select %p163, %s18, 1
      %p165 = scmp.lt.s32.totalorder %s162, 31
      %s166 = scalar_select %p165, %s162, 31
      %p167 = scmp.lt.s32.totalorder %s19, 0
      %s168 = scalar_select %p167, %s19, 0
      %s169 = sadd.s32 %s168, %s166
      %s170 = smul.addr %s164, 32
      %s171 = sadd.s32 %s169, %s170
      %s172 = smul.addr %s171, 4
      %s173 = scalar_lea.vmem %s0, %s172
      %p174 = pneg %p57
      %p175 = pneg %p54
      %s176 = smul.u32 2, %s20
      %p177 = scmp.lt.s32.totalorder %s176, 1
      %s178 = scalar_select %p177, %s176, 1
      %s179 = smul.addr %s178, 4
      %s180 = scalar_lea.vmem %s1, %s179
      %p181 = pneg %p83
      %p182 = pneg %p80
      %p183 = pneg %p111
      %p184 = pneg %p108
      %p185 = scmp.lt.s32.totalorder %s18, 1
      %s186 = scalar_select %p185, %s18, 1
      %p187 = scmp.lt.s32.totalorder %s19, 0
      %s188 = scalar_select %p187, %s19, 0
      %s189 = smul.addr %s186, 9
      %s190 = sadd.s32 %s188, %s189
      %s191 = smul.addr %s190, 8
      %s192 = scalar_lea.vmem %s2, %s191
      %s193 = smul.u32 32, %s20
      %p194 = scmp.lt.s32.totalorder %s18, 1
      %s195 = scalar_select %p194, %s18, 1
      %p196 = scmp.lt.s32.totalorder %s193, 31
      %s197 = scalar_select %p196, %s193, 31
      %p198 = scmp.lt.s32.totalorder %s19, 0
      %s199 = scalar_select %p198, %s19, 0
      %s200 = sadd.s32 %s199, %s197
      %s201 = smul.addr %s195, 32
      %s202 = sadd.s32 %s200, %s201
      %s203 = smul.addr %s202, 4
      %s204 = scalar_lea.vmem %s0, %s203
      %s205 = smul.u32 32, %s20
      %s206 = smul.u32 2, %s20
      %p207 = scmp.lt.s32.totalorder %s206, 1
      %s208 = scalar_select %p207, %s206, 1
      %s209 = smul.addr %s208, 4
      %s210 = scalar_lea.vmem %s1, %s209
      %s211 = smul.u32 2, %s20
      %p212 = scmp.lt.s32.totalorder %s18, 1
      %s213 = scalar_select %p212, %s18, 1
      %p214 = scmp.lt.s32.totalorder %s19, 0
      %s215 = scalar_select %p214, %s19, 0
      %s216 = smul.addr %s213, 9
      %s217 = sadd.s32 %s215, %s216
      %s218 = smul.addr %s217, 8
      %s219 = scalar_lea.vmem %s2, %s218
      %p221 = scmp.eq.s32.totalorder %s20, 0
      // Predicated region
      $region29: #{tpu_custom_call.1} parent=27 // pred_check
        %p222 = pneg %p221
      $region30: #{tpu_custom_call.1} parent=27 // pred_check_branch
        %224 = sbr.rel (%p222) target = $region32
      $region31: #{tpu_custom_call.1} parent=27 // pred_region
        %vm225 = vcmask 130048
        %226 = vst.msk [vmem:[%s219] sm:$0xff] %vm225, 0.0
        %227 = vst.msk [vmem:[%s219 + $0x8] sm:$0xff] %vm225, 0.0
        %228 = vst.msk [vmem:[%s219 + $0x10] sm:$0xff] %vm225, 0.0
        %229 = vst.msk [vmem:[%s219 + $0x18] sm:$0xff] %vm225, 0.0
        %230 = vst.msk [vmem:[%s219 + $0x20] sm:$0xff] %vm225, 0.0
        %231 = vst.msk [vmem:[%s219 + $0x28] sm:$0xff] %vm225, 0.0
        %232 = vst.msk [vmem:[%s219 + $0x30] sm:$0xff] %vm225, 0.0
        %233 = vst.msk [vmem:[%s219 + $0x38] sm:$0xff] %vm225, 0.0
        %234 = vst.msk [vmem:[%s219 + $0x40] sm:$0xff] %vm225, 0.0
      $region32: #{tpu_custom_call.1} parent=27 // pred_fallthru
        _
      %v235 = vld [vmem:[%s219] sm:$0xff]
      %v236 = vld [vmem:[%s219 + $0x8] sm:$0xff]
      %v237 = vld [vmem:[%s219 + $0x10] sm:$0xff]
      %v238 = vld [vmem:[%s219 + $0x18] sm:$0xff]
      %v239 = vld [vmem:[%s219 + $0x20] sm:$0xff]
      %v240 = vld [vmem:[%s219 + $0x28] sm:$0xff]
      %v241 = vld [vmem:[%s219 + $0x30] sm:$0xff]
      %v242 = vld [vmem:[%s219 + $0x38] sm:$0xff]
      %v243 = vld [vmem:[%s219 + $0x40] sm:$0xff]
      %v244 = vld [vmem:[%s210] sm:$0xff]
      %v245 = vld [vmem:[%s210 + $0x8] sm:$0xff]
      %v246 = vld [vmem:[%s210 + $0x10] sm:$0xff]
      %v247 = vld [vmem:[%s210 + $0x18] sm:$0xff]
      %v248 = vld [vmem:[%s210 + $0x20] sm:$0xff]
      %v249 = vld [vmem:[%s210 + $0x28] sm:$0xff]
      %v250 = vld [vmem:[%s210 + $0x30] sm:$0xff]
      %v251 = vld [vmem:[%s210 + $0x38] sm:$0xff]
      %v252 = vld [vmem:[%s210 + $0x40] sm:$0xff]
      %v253 = vld [vmem:[%s204] sm:$0xf]
      %v254 = vld [vmem:[%s204 + $0x4] sm:$0xf]
      %v255 = vld [vmem:[%s204 + $0x8] sm:$0xf]
      %v256 = vld [vmem:[%s204 + $0xc] sm:$0xf]
      %v257 = vld [vmem:[%s204 + $0x10] sm:$0xf]
      %v258 = vld [vmem:[%s204 + $0x14] sm:$0xf]
      %v259 = vld [vmem:[%s204 + $0x18] sm:$0xf]
      %v260 = vld [vmem:[%s204 + $0x1c] sm:$0xf]
      %v261 = vld [vmem:[%s204 + $0x20] sm:$0xf]
      %v262 = vld [vmem:[%s204 + $0x24] sm:$0xf]
      %v263 = vld [vmem:[%s204 + $0x28] sm:$0xf]
      %v264 = vld [vmem:[%s204 + $0x2c] sm:$0xf]
      %v265 = vld [vmem:[%s204 + $0x30] sm:$0xf]
      %v266 = vld [vmem:[%s204 + $0x34] sm:$0xf]
      %v267 = vld [vmem:[%s204 + $0x38] sm:$0xf]
      %v268 = vld [vmem:[%s204 + $0x3c] sm:$0xf]
      %v269 = vld [vmem:[%s204 + $0x40] sm:$0xf]
      %v270 = vld [vmem:[%s204 + $0x44] sm:$0xf]
      %v271 = vld [vmem:[%s204 + $0x48] sm:$0xf]
      %v272 = vld [vmem:[%s204 + $0x4c] sm:$0xf]
      %v273 = vld [vmem:[%s204 + $0x50] sm:$0xf]
      %v274 = vld [vmem:[%s204 + $0x54] sm:$0xf]
      %v275 = vld [vmem:[%s204 + $0x58] sm:$0xf]
      %v276 = vld [vmem:[%s204 + $0x5c] sm:$0xf]
      %v277 = vld [vmem:[%s204 + $0x60] sm:$0xf]
      %v278 = vld [vmem:[%s204 + $0x64] sm:$0xf]
      %v279 = vld [vmem:[%s204 + $0x68] sm:$0xf]
      %v280 = vld [vmem:[%s204 + $0x6c] sm:$0xf]
      %v281 = vld [vmem:[%s204 + $0x70] sm:$0xf]
      %v282 = vld [vmem:[%s204 + $0x74] sm:$0xf]
      %v283 = vld [vmem:[%s204 + $0x78] sm:$0xf]
      %v284 = vld [vmem:[%s204 + $0x7c] sm:$0xf]
      %v294 = vunpack.c.l.b16 %v244
      %v295 = vunpack.c.h.b16 %v244
      %v296 = vunpack.c.l.b16 %v245
      %v297 = vunpack.c.h.b16 %v245
      %v298 = vunpack.c.l.b16 %v246
      %v299 = vunpack.c.h.b16 %v246
      %v300 = vunpack.c.l.b16 %v247
      %v301 = vunpack.c.h.b16 %v247
      %v302 = vunpack.c.l.b16 %v248
      %v303 = vunpack.c.h.b16 %v248
      %v304 = vunpack.c.l.b16 %v249
      %v305 = vunpack.c.h.b16 %v249
      %v306 = vunpack.c.l.b16 %v250
      %v307 = vunpack.c.h.b16 %v250
      %v308 = vunpack.c.l.b16 %v251
      %v309 = vunpack.c.h.b16 %v251
      %v310 = vunpack.c.l.b16 %v252
      %v311 = vunpack.c.h.b16 %v252
      %v312 = vpack.c.b16 %v296, %v294
      %v313 = vpack.c.b16 %v297, %v295
      %v314 = vpack.c.b16 %v300, %v298
      %v315 = vpack.c.b16 %v301, %v299
      %v316 = vpack.c.b16 %v304, %v302
      %v317 = vpack.c.b16 %v305, %v303
      %v318 = vpack.c.b16 %v308, %v306
      %v319 = vpack.c.b16 %v309, %v307
      %v320 = vpack.c.b16 %v310, %v310
      %v321 = vpack.c.b16 %v311, %v311
      %v364 = vunpack.c.l.b16 %v253
      %v365 = vunpack.c.l.b16 %v254
      %v366 = vunpack.c.l.b16 %v255
      %v367 = vunpack.c.l.b16 %v256
      %v368 = vunpack.c.l.b16 %v257
      %v369 = vunpack.c.l.b16 %v258
      %v370 = vunpack.c.l.b16 %v259
      %v371 = vunpack.c.l.b16 %v260
      %v372 = vunpack.c.l.b16 %v261
      %v373 = vunpack.c.l.b16 %v262
      %v374 = vunpack.c.l.b16 %v263
      %v375 = vunpack.c.l.b16 %v264
      %v376 = vunpack.c.l.b16 %v265
      %v377 = vunpack.c.l.b16 %v266
      %v378 = vunpack.c.l.b16 %v267
      %v379 = vunpack.c.l.b16 %v268
      %v380 = vunpack.c.l.b16 %v269
      %v381 = vunpack.c.l.b16 %v270
      %v382 = vunpack.c.l.b16 %v271
      %v383 = vunpack.c.l.b16 %v272
      %v384 = vunpack.c.l.b16 %v273
      %v385 = vunpack.c.l.b16 %v274
      %v386 = vunpack.c.l.b16 %v275
      %v387 = vunpack.c.l.b16 %v276
      %v388 = vunpack.c.l.b16 %v277
      %v389 = vunpack.c.l.b16 %v278
      %v390 = vunpack.c.l.b16 %v279
      %v391 = vunpack.c.l.b16 %v280
      %v392 = vunpack.c.l.b16 %v281
      %v393 = vunpack.c.l.b16 %v282
      %v394 = vunpack.c.l.b16 %v283
      %v395 = vunpack.c.l.b16 %v284
      %v396 = vpack.c.b16 %v365, %v364
      %v397 = vpack.c.b16 %v367, %v366
      %v398 = vpack.c.b16 %v369, %v368
      %v399 = vpack.c.b16 %v371, %v370
      %v400 = vpack.c.b16 %v373, %v372
      %v401 = vpack.c.b16 %v375, %v374
      %v402 = vpack.c.b16 %v377, %v376
      %v403 = vpack.c.b16 %v379, %v378
      %v404 = vpack.c.b16 %v381, %v380
      %v405 = vpack.c.b16 %v383, %v382
      %v406 = vpack.c.b16 %v385, %v384
      %v407 = vpack.c.b16 %v387, %v386
      %v408 = vpack.c.b16 %v389, %v388
      %v409 = vpack.c.b16 %v391, %v390
      %v410 = vpack.c.b16 %v393, %v392
      %v411 = vpack.c.b16 %v395, %v394
      %428 = vmatprep.subr.bf16.mxu0 0
      %429 = vmatpush1.bf16.msra.mxu0 %v396
      %430 = vmatprep.subr.bf16.mxu0 0
      %431 = vmatpush1.bf16.msra.mxu0 %v397
      %432 = vmatprep.subr.bf16.mxu0 0
      %433 = vmatpush1.bf16.msra.mxu0 %v398
      %434 = vmatprep.subr.bf16.mxu0 0
      %435 = vmatpush1.bf16.msra.mxu0 %v399
      %436 = vmatprep.subr.bf16.mxu0 0
      %437 = vmatpush1.bf16.msra.mxu0 %v400
      %438 = vmatprep.subr.bf16.mxu0 0
      %439 = vmatpush1.bf16.msra.mxu0 %v401
      %440 = vmatprep.subr.bf16.mxu0 0
      %441 = vmatpush1.bf16.msra.mxu0 %v402
      %442 = vmatprep.subr.bf16.mxu0 0
      %443 = vmatpush1.bf16.msra.mxu0 %v403
      %444 = vmatprep.subr.bf16.mxu0 0
      %445 = vmatpush1.bf16.msra.mxu0 %v404
      %446 = vmatprep.subr.bf16.mxu0 0
      %447 = vmatpush1.bf16.msra.mxu0 %v405
      %448 = vmatprep.subr.bf16.mxu0 0
      %449 = vmatpush1.bf16.msra.mxu0 %v406
      %450 = vmatprep.subr.bf16.mxu0 0
      %451 = vmatpush1.bf16.msra.mxu0 %v407
      %452 = vmatprep.subr.bf16.mxu0 0
      %453 = vmatpush1.bf16.msra.mxu0 %v408
      %454 = vmatprep.subr.bf16.mxu0 0
      %455 = vmatpush1.bf16.msra.mxu0 %v409
      %456 = vmatprep.subr.bf16.mxu0 0
      %457 = vmatpush1.bf16.msra.mxu0 %v410
      %458 = vmatprep.subr.bf16.mxu0 0
      %459 = vmatpush1.bf16.msra.mxu0 %v411
      %460 = vmatprep.mubr.bf16.mxu0 %v313
      %461 = vmatmul.mubr.bf16.gmra.mrb[0].mxu0 %v312
      %v462 = vpop.f32.mrb[0].mxu0
      %v463 = vadd.f32 0.0, %v462
      %v464 = vpop.f32.mrb[0].mxu0
      %v465 = vpop.f32.mrb[0].mxu0
      %v466 = vadd.f32 0.0, %v465
      %v467 = vpop.f32.mrb[0].mxu0
      %468 = vmatprep.mubr.bf16.mxu0 %v315
      %469 = vmatmul.mubr.bf16.gmra.mrb[0].mxu0 %v314
      %v470 = vpop.f32.mrb[0].mxu0
      %v471 = vadd.f32 0.0, %v470
      %v472 = vpop.f32.mrb[0].mxu0
      %v473 = vpop.f32.mrb[0].mxu0
      %v474 = vadd.f32 0.0, %v473
      %v475 = vpop.f32.mrb[0].mxu0
      %476 = vmatprep.mubr.bf16.mxu0 %v317
      %477 = vmatmul.mubr.bf16.gmra.mrb[0].mxu0 %v316
      %v478 = vpop.f32.mrb[0].mxu0
      %v479 = vadd.f32 0.0, %v478
      %v480 = vpop.f32.mrb[0].mxu0
      %v481 = vpop.f32.mrb[0].mxu0
      %v482 = vadd.f32 0.0, %v481
      %v483 = vpop.f32.mrb[0].mxu0
      %484 = vmatprep.mubr.bf16.mxu0 %v319
      %485 = vmatmul.mubr.bf16.gmra.mrb[0].mxu0 %v318
      %v486 = vpop.f32.mrb[0].mxu0
      %v487 = vadd.f32 0.0, %v486
      %v488 = vpop.f32.mrb[0].mxu0
      %v489 = vpop.f32.mrb[0].mxu0
      %v490 = vadd.f32 0.0, %v489
      %v491 = vpop.f32.mrb[0].mxu0
      %492 = vmatprep.mubr.bf16.mxu0 %v321
      %493 = vmatmul.mubr.bf16.gmra.mrb[0].mxu0 %v320
      %v494 = vpop.f32.mrb[0].mxu0
      %v495 = vadd.f32 0.0, %v494
      %v496 = vpop.f32.mrb[0].mxu0
      %v497 = vpop.f32.mrb[0].mxu0
      %v498 = vpop.f32.mrb[0].mxu0
      %499 = vdwg.mxu0
      %v500 = vadd.f32 %v235, %v463
      %v501 = vadd.f32 %v236, %v466
      %v502 = vadd.f32 %v237, %v471
      %v503 = vadd.f32 %v238, %v474
      %v504 = vadd.f32 %v239, %v479
      %v505 = vadd.f32 %v240, %v482
      %v506 = vadd.f32 %v241, %v487
      %v507 = vadd.f32 %v242, %v490
      %v508 = vadd.f32 %v243, %v495
      %vm509 = vcmask 130048
      %510 = vst.msk [vmem:[%s219] sm:$0xff] %vm509, %v500
      %511 = vst.msk [vmem:[%s219 + $0x8] sm:$0xff] %vm509, %v501
      %512 = vst.msk [vmem:[%s219 + $0x10] sm:$0xff] %vm509, %v502
      %513 = vst.msk [vmem:[%s219 + $0x18] sm:$0xff] %vm509, %v503
      %514 = vst.msk [vmem:[%s219 + $0x20] sm:$0xff] %vm509, %v504
      %515 = vst.msk [vmem:[%s219 + $0x28] sm:$0xff] %vm509, %v505
      %516 = vst.msk [vmem:[%s219 + $0x30] sm:$0xff] %vm509, %v506
      %517 = vst.msk [vmem:[%s219 + $0x38] sm:$0xff] %vm509, %v507
      %518 = vst.msk [vmem:[%s219 + $0x40] sm:$0xff] %vm509, %v508
      %p519 = scmp.lt.s32.totalorder %s18, 1
      %s520 = scalar_select %p519, %s18, 1
      %p521 = scmp.lt.s32.totalorder %s19, 0
      %s522 = scalar_select %p521, %s19, 0
      %s523 = smul.addr %s520, 9
      %s524 = sadd.s32 %s522, %s523
      %s525 = smul.addr %s524, 8
      %s526 = scalar_lea.vmem %s2, %s525
      // Predicated region
      $region33: #{tpu_custom_call.1} parent=27 // pred_check
        %p527 = pneg %p108
      $region34: #{tpu_custom_call.1} parent=27 // pred_check_branch
        %529 = sbr.rel (%p527) target = $region36
      $region35: #{tpu_custom_call.1} parent=27 // pred_region
        _
      $region36: #{tpu_custom_call.1} parent=27 // pred_fallthru
        _
    $region28: #{tpu_custom_call.1} parent=5 // pred_fallthru
      _
    %p530 = scmp.le.s32.totalorder 2, %s8
    // Predicated region
    $region37: #{tpu_custom_call.1} parent=5 // pred_check
      %p531 = pneg %p530
    $region38: #{tpu_custom_call.1} parent=5 // pred_check_branch
      %533 = sbr.rel (%p531) target = $region40
    $region39: #{tpu_custom_call.1} parent=5 // pred_region
      %s534 = ssub.s32 %s8, 2
      // Predicated region
      $region41: #{tpu_custom_call.1} parent=39 // pred_check
        %p535 = pneg %p114
      $region42: #{tpu_custom_call.1} parent=39 // pred_check_branch
        %537 = sbr.rel (%p535) target = $region44
      $region43: #{tpu_custom_call.1} parent=39 // pred_region
        %p538 = scmp.lt.s32.totalorder %s21, 1
        %s539 = scalar_select %p538, %s21, 1
        %p540 = scmp.lt.s32.totalorder %s22, 0
        %s541 = scalar_select %p540, %s22, 0
        %s542 = smul.addr %s539, 9
        %s543 = sadd.s32 %s541, %s542
        %s544 = smul.addr %s543, 8
        %s545 = scalar_lea.vmem %s2, %s544
      $region44: #{tpu_custom_call.1} parent=39 // pred_fallthru
        _
    $region40: #{tpu_custom_call.1} parent=5 // pred_fallthru
      _
  $region6: #{tpu_custom_call.1} parent=0 // loop_footer
    %s12 = sadd.s32 1, %s8
  $region7: #{tpu_custom_call.1} parent=0 // loop_footer_branch
    %7 = sbr.rel target = $region3
  $region8: #{tpu_custom_call.1} parent=0 // loop_exit
    _

</llo_original>
